<compile_context>
chip_gen: v6e
topology: v6e:2x2x1
jax: 0.10.0
libtpu: 0.0.40
codegen_flags: <defaults>
</compile_context>

<pallas_src>
import functools

import numpy as np
import jax
import jax.numpy as jnp
from jax import lax
from jax.experimental import pallas as pl
from jax.experimental.pallas import tpu as pltpu

_TWO_PI = 2.0 * np.pi


def _round_up(v, m):
    return ((v + m - 1) // m) * m


def _af_kernel(x_ref, par_ref, out_ref, mn_ref, mx_ref, *,
               n_harmonics, valid_l, tile_l, rescale, clips_min, cut_off,
               use_recurrence, two_phase, has_tail, resync_every=16):
    """One (function-group, phase, L-tile) grid step.

    x_ref:   (Bx, TL) evaluation points (Bx == 1 when x is shared by all funcs)
    par_ref: (B, PW)  packed per-function params:
             [shift, 2*pi/period, range_lo, range_hi,
              c1[0..H-1], c2[0..H-1], (harm[0..H-1], general path only)]
    out_ref: (B, TL)
    mn_ref, mx_ref: (B, 1) VMEM scratch for the two-pass rescale
    """
    phase = pl.program_id(1)
    li = pl.program_id(2)
    H = n_harmonics

    x = x_ref[...]
    shift = par_ref[:, 0:1]
    inv_period = par_ref[:, 1:2]
    lo = par_ref[:, 2:3]
    hi = par_ref[:, 3:4]

    theta = inv_period * (x - shift)            # (B, TL) (broadcasts if Bx==1)

    acc = jnp.zeros_like(theta)
    if use_recurrence:
        # Integer harmonics [0..H-1]: angle-addition recurrence -> only 2
        # transcendentals per point (+2 every `resync_every` harmonics to
        # bound recurrence drift); everything else is VPU mul/add.
        ct = jnp.cos(theta)
        st = jnp.sin(theta)
        ck = jnp.ones_like(theta)               # cos(0*theta)
        sk = jnp.zeros_like(theta)              # sin(0*theta)
        for h in range(H):
            if h > 0 and h % resync_every == 0:
                hf = jnp.float32(h)
                ck = jnp.cos(hf * theta)        # exact resync (drift control)
                sk = jnp.sin(hf * theta)
            acc = acc + par_ref[:, 4 + h:5 + h] * ck \
                      + par_ref[:, 4 + H + h:5 + H + h] * sk
            if h + 1 < H:
                ck, sk = ck * ct - sk * st, sk * ct + ck * st
    else:
        # Arbitrary harmonic values: amplitude/phase fold,
        # A_h * cos(h*theta - phi_h) -> one transcendental per harmonic.
        for h in range(H):
            amp = par_ref[:, 4 + h:5 + h]
            phi = par_ref[:, 4 + H + h:5 + H + h]
            hv = par_ref[:, 4 + 2 * H + h:5 + 2 * H + h]
            acc = acc + amp * jnp.cos(hv * theta - phi)
    # TODO(synk): for very large H (>~32) switch the harmonic loops to
    # lax.fori_loop over chunks to bound vreg live ranges (avoid spills).

    vals = acc

    def masked(v, fill):
        if not has_tail:
            return v
        lane = lax.broadcasted_iota(jnp.int32, v.shape, 1)
        return jnp.where(lane + li * tile_l < valid_l, v, fill)

    def finalize(v, mn, mx):
        if rescale is not None:
            # Fold rescale span into one per-row (B,1) reciprocal, then only
            # full-width mul/add on the VPU.
            inv = (jnp.float32(rescale[1] - rescale[0])
                   / (mx - mn + jnp.float32(1e-8)))
            v = (v - mn) * inv + jnp.float32(rescale[0])
        if clips_min is not None:
            v = jnp.maximum(v, jnp.float32(clips_min))
        if cut_off:
            v = jnp.where((x < lo) | (x > hi), jnp.float32(0.0), v)
        return v

    if rescale is None:
        out_ref[...] = finalize(vals, None, None)
    elif not two_phase:
        # L fits in one tile: single-pass min/max.
        mn = jnp.min(masked(vals, jnp.inf), axis=-1, keepdims=True)
        mx = jnp.max(masked(vals, -jnp.inf), axis=-1, keepdims=True)
        out_ref[...] = finalize(vals, mn, mx)
    else:
        # Two-pass rescale across L tiles.
        @pl.when(phase == 0)
        def _():
            @pl.when(li == 0)
            def _():
                mn_ref[...] = jnp.full(mn_ref.shape, jnp.inf, jnp.float32)
                mx_ref[...] = jnp.full(mx_ref.shape, -jnp.inf, jnp.float32)
            mn_ref[...] = jnp.minimum(
                mn_ref[...],
                jnp.min(masked(vals, jnp.inf), axis=-1, keepdims=True))
            mx_ref[...] = jnp.maximum(
                mx_ref[...],
                jnp.max(masked(vals, -jnp.inf), axis=-1, keepdims=True))

        @pl.when(phase == 1)
        def _():
            out_ref[...] = finalize(vals, mn_ref[...], mx_ref[...])


def _has_default_integer_harmonics(harmonics):
    """True iff harmonics are concrete and exactly [0..H-1] per row."""
    try:
        h = np.asarray(jax.device_get(harmonics))
    except Exception:
        return False          # traced value: caller should pass the flag
    if h.ndim != 2:
        return False
    return bool(np.all(h == np.arange(h.shape[1], dtype=np.float64)[None, :]))


def _choose_tiles(func_num, L, max_block_bytes):
    """Pick (B rows, TL lanes) so the x/out block is ~max_block_bytes."""
    l128 = _round_up(max(L, 1), 128)
    max_b = _round_up(func_num, 8)
    if 8 * l128 * 4 <= max_block_bytes:
        # The whole L row fits per block: keep L untiled and grow B instead.
        tl = l128
        b = 8
        while b + 8 <= max_b and (b + 8) * tl * 4 <= max_block_bytes:
            b += 8
    else:
        b = 8
        tl = max(128, (max_block_bytes // (8 * 4)) // 128 * 128)
        tl = min(tl, l128)
    return b, tl


def arbitrary_function_forward(x, cos_coeffs, sin_coeffs, harmonics, ranges,
                               rescale=None, clips_min=None, cut_off=False,
                               integer_harmonics=None,
                               max_block_bytes=2 << 20):
    """Pallas implementation of ArbitraryFunction.forward.

    Args:
      x:           (N, *extra) or (1, *extra)
      cos_coeffs:  (N, H)
      sin_coeffs:  (N, H)
      harmonics:   (N, H) or None (None => integer harmonics [0..H-1])
      ranges:      (N, 2)
      rescale:     optional (min, max)
      clips_min:   optional float
      cut_off:     bool
      integer_harmonics: pass True/False explicitly under jax.jit; None
                   auto-detects on concrete arrays only.
      max_block_bytes: tiling knob (x/out block byte budget).
    Returns:
      (N, *extra) float32
    """
    func_num, n_harm = cos_coeffs.shape
    extra = tuple(x.shape[1:])
    assert x.shape[0] == func_num or x.shape[0] == 1
    shared_x = (x.shape[0] == 1)
    L = int(np.prod(extra)) if len(extra) > 0 else 1

    if integer_harmonics is None:
        integer_harmonics = (harmonics is None
                             or _has_default_integer_harmonics(harmonics))
    use_recurrence = bool(integer_harmonics)
    if not use_recurrence:
        assert harmonics is not None

    x2 = x.reshape(x.shape[0], L).astype(jnp.float32)

    # Packed per-function parameters: [shift, 2*pi/period, lo, hi, c1, c2(, h)]
    ranges = jnp.asarray(ranges, jnp.float32)
    shift = ranges[:, 0]
    period = ranges[:, 1] - ranges[:, 0]
    inv_period = jnp.float32(_TWO_PI) / period
    scal = jnp.stack([shift, inv_period, ranges[:, 0], ranges[:, 1]], axis=-1)

    if use_recurrence:
        parts = [scal, cos_coeffs.astype(jnp.float32),
                 sin_coeffs.astype(jnp.float32)]
    else:
        cc = cos_coeffs.astype(jnp.float32)
        ss = sin_coeffs.astype(jnp.float32)
        amp = jnp.sqrt(cc * cc + ss * ss)
        phi = jnp.arctan2(ss, cc)
        parts = [scal, amp, phi, jnp.asarray(harmonics, jnp.float32)]
    params = jnp.concatenate(parts, axis=-1)          # (func_num, PW)
    pw = params.shape[-1]

    B, TL = _choose_tiles(func_num, L, int(max_block_bytes))
    l_pad = _round_up(L, TL)
    n_pad = _round_up(func_num, B)
    n_groups = n_pad // B
    n_l = l_pad // TL
    two_phase = (rescale is not None) and (n_l > 1)
    n_phase = 2 if two_phase else 1

    # Row-pad params with safe scalars (unit period, zero coeffs) so dead rows
    # stay finite; they are sliced off afterwards.
    if n_pad != func_num:
        pad_row = jnp.concatenate(
            [jnp.array([0.0, 1.0, 0.0, 1.0], jnp.float32),
             jnp.zeros((pw - 4,), jnp.float32)])[None, :]
        params = jnp.concatenate(
            [params, jnp.tile(pad_row, (n_pad - func_num, 1))], axis=0)

    # TODO(synk): the x row/lane padding below and the final output slice are
    # extra HBM passes when shapes are not already aligned; removing them
    # needs masked edge stores / a pl.when-handled ragged last group.
    if (not shared_x) and n_pad != func_num:
        x2 = jnp.concatenate(
            [x2, jnp.zeros((n_pad - func_num, L), jnp.float32)], axis=0)
    if l_pad != L:
        x2 = jnp.pad(x2, ((0, 0), (0, l_pad - L)))

    kernel = functools.partial(
        _af_kernel, n_harmonics=n_harm, valid_l=L, tile_l=TL,
        rescale=rescale, clips_min=clips_min, cut_off=bool(cut_off),
        use_recurrence=use_recurrence, two_phase=two_phase,
        has_tail=(l_pad != L))

    x_rows = 1 if shared_x else B
    if shared_x:
        x_map = lambda i, p, l: (0, l)        # same x block reused by all funcs
    else:
        x_map = lambda i, p, l: (i, l)
    if two_phase:
        # Phase 0 keeps the output block index constant -> no output DMA.
        out_map = lambda i, p, l: (i, l * p)
    else:
        out_map = lambda i, p, l: (i, l)

    # VMEM budget (double-buffered x + out + params) with headroom so the
    # chosen tiles also compile under v5e's 16 MiB default scoped VMEM.
    block_bytes = (x_rows * TL + B * TL + B * _round_up(pw, 128)) * 4
    vmem_limit = int(min(max(4 * block_bytes + (4 << 20), 16 << 20), 48 << 20))

    out = pl.pallas_call(
        kernel,
        out_shape=jax.ShapeDtypeStruct((n_pad, l_pad), jnp.float32),
        grid_spec=pltpu.PrefetchScalarGridSpec(
            num_scalar_prefetch=0,
            grid=(n_groups, n_phase, n_l),
            in_specs=[
                pl.BlockSpec((x_rows, TL), x_map),           # x
                pl.BlockSpec((B, pw), lambda i, p, l: (i, 0)),  # packed params
            ],
            out_specs=pl.BlockSpec((B, TL), out_map),
            scratch_shapes=[pltpu.VMEM((B, 1), jnp.float32),   # running min
                            pltpu.VMEM((B, 1), jnp.float32)],  # running max
        ),
        compiler_params=pltpu.CompilerParams(
            # TODO(synk): on v7x consider pltpu.CORE_PARALLEL on the group
            # axis to shard across the 2 TensorCores.
            dimension_semantics=("parallel", "arbitrary", "arbitrary"),
            vmem_limit_bytes=vmem_limit),
    )(x2, params)

    if n_pad != func_num or l_pad != L:
        out = out[:func_num, :L]
    return out.reshape((func_num,) + extra)


def _ref_forward(x, cos_c, sin_c, harm, ranges, rescale, clips_min, cut_off):
    """Pure-JAX reference mirroring the PyTorch forward exactly."""
    N, H = harm.shape
    extra = x.shape[1:]
    if x.shape[0] == 1:
        x = jnp.broadcast_to(x, (N,) + tuple(extra))
    xr = x.reshape(N, 1, -1).astype(jnp.float32)
    shifts = ranges[:, 0]
    period = ranges[:, 1] - ranges[:, 0]
    fi = (2 * jnp.pi / period[:, None, None] * harm[..., None]
          * (xr - shifts[:, None, None]))
    vals = jnp.sum(cos_c[..., None] * jnp.cos(fi)
                   + sin_c[..., None] * jnp.sin(fi), axis=1)
    if rescale is not None:
        mn = vals.min(axis=-1, keepdims=True)
        mx = vals.max(axis=-1, keepdims=True)
        vals = (vals - mn) / (mx - mn + 1e-8)
        vals = vals * (rescale[1] - rescale[0]) + rescale[0]
    if clips_min is not None:
        vals = jnp.maximum(vals, clips_min)
    if cut_off:
        x_out = ((xr[:, 0] < ranges[:, 0][:, None])
                 | (xr[:, 0] > ranges[:, 1][:, None]))
        vals = jnp.where(x_out, 0.0, vals)
    return vals.reshape((N,) + tuple(extra))


if __name__ == "__main__":
    key = jax.random.PRNGKey(0)
    ks = jax.random.split(key, 10)

    # ---- Test 1: integer harmonics (fast recurrence path), aligned shapes --
    func_num, n_harm, spatial = 4, 8, 16
    cos1 = jax.random.normal(ks[0], (func_num, n_harm), dtype=jnp.float32)
    sin1 = jax.random.normal(ks[1], (func_num, n_harm), dtype=jnp.float32)
    harm1 = jnp.broadcast_to(
        jnp.arange(n_harm, dtype=jnp.float32)[None, :], (func_num, n_harm))
    rng1 = jnp.broadcast_to(
        jnp.array([-1.0, 1.0], jnp.float32)[None, :], (func_num, 2))
    x1 = jax.random.uniform(ks[2], (func_num, spatial, spatial),
                            dtype=jnp.float32, minval=-1.5, maxval=1.5)
    out1 = jax.block_until_ready(arbitrary_function_forward(
        x1, cos1, sin1, harm1, rng1, rescale=(0.0, 1.0), clips_min=0.1,
        cut_off=True, integer_harmonics=True))
    ref1 = jax.block_until_ready(_ref_forward(
        x1, cos1, sin1, harm1, rng1, (0.0, 1.0), 0.1, True))
    assert out1.shape == (func_num, spatial, spatial)
    np.testing.assert_allclose(np.asarray(out1), np.asarray(ref1),
                               rtol=1e-4, atol=1e-4)

    # ---- Test 2: arbitrary (non-integer) harmonics, row + lane padding -----
    n2, h2 = 5, 6
    cos2 = jax.random.normal(ks[3], (n2, h2), dtype=jnp.float32)
    sin2 = jax.random.normal(ks[4], (n2, h2), dtype=jnp.float32)
    harm2 = jnp.broadcast_to(
        jnp.arange(h2, dtype=jnp.float32)[None, :] * 0.5 + 0.25, (n2, h2))
    rng2 = jnp.broadcast_to(
        jnp.array([-2.0, 3.0], jnp.float32)[None, :], (n2, 2))
    x2 = jax.random.uniform(ks[5], (n2, 10, 10), dtype=jnp.float32,
                            minval=-2.5, maxval=3.5)
    out2 = jax.block_until_ready(arbitrary_function_forward(
        x2, cos2, sin2, harm2, rng2, rescale=(-1.0, 2.0), clips_min=None,
        cut_off=True))                       # integer_harmonics auto -> False
    ref2 = jax.block_until_ready(_ref_forward(
        x2, cos2, sin2, harm2, rng2, (-1.0, 2.0), None, True))
    assert out2.shape == (n2, 10, 10)
    np.testing.assert_allclose(np.asarray(out2), np.asarray(ref2),
                               rtol=1e-4, atol=1e-4)

    # ---- Test 3: shared x (x.shape[0]==1), multi L-tile two-pass rescale,
    #      multiple function groups, ragged L tail (small block budget forces
    #      L tiling so the two-phase path is exercised at small shapes). ------
    n3, h3, L3 = 12, 5, 500
    cos3 = jax.random.normal(ks[6], (n3, h3), dtype=jnp.float32)
    sin3 = jax.random.normal(ks[7], (n3, h3), dtype=jnp.float32)
    harm3 = jnp.broadcast_to(
        jnp.arange(h3, dtype=jnp.float32)[None, :], (n3, h3))
    rng3 = jnp.stack(
        [jnp.full((n3,), -1.2, jnp.float32),
         1.0 + 0.1 * jnp.arange(n3, dtype=jnp.float32)], axis=-1)
    x3 = jax.random.uniform(ks[8], (1, L3), dtype=jnp.float32,
                            minval=-1.5, maxval=2.5)
    out3 = jax.block_until_ready(arbitrary_function_forward(
        x3, cos3, sin3, harm3, rng3, rescale=(0.0, 1.0), clips_min=None,
        cut_off=True, integer_harmonics=True, max_block_bytes=4096))
    ref3 = jax.block_until_ready(_ref_forward(
        x3, cos3, sin3, harm3, rng3, (0.0, 1.0), None, True))
    assert out3.shape == (n3, L3)
    np.testing.assert_allclose(np.asarray(out3), np.asarray(ref3),
                               rtol=1e-4, atol=1e-4)

    print("KERNEL_OK")
</pallas_src>

<mosaic_0001>
module attributes {stable_mosaic.version = 11 : i64} {
  func.func @_af_kernel(%arg0: i32, %arg1: i32, %arg2: i32, %arg3: memref<8x256xf32, #tpu.memory_space<vmem>>, %arg4: memref<8x20xf32, #tpu.memory_space<vmem>>, %arg5: memref<8x256xf32, #tpu.memory_space<vmem>>, %arg6: memref<8x1xf32, #tpu.memory_space<vmem>>, %arg7: memref<8x1xf32, #tpu.memory_space<vmem>>) attributes {dimension_semantics = [#tpu.dimension_semantics<parallel>, #tpu.dimension_semantics<arbitrary>, #tpu.dimension_semantics<arbitrary>], iteration_bounds = array<i64: 1, 1, 1>, scalar_prefetch = 0 : i64, scratch_operands = 2 : i64, tpu.core_type = #tpu.core_type<tc>, window_params = [{transform_indices = @transform_0, window_bounds = array<i64: 8, 256>}, {transform_indices = @transform_1, window_bounds = array<i64: 8, 20>}, {transform_indices = @transform_2, window_bounds = array<i64: 8, 256>}]} {
    %c0 = arith.constant 0 : index
    %c0_0 = arith.constant 0 : index
    %0 = vector.load %arg3[%c0, %c0_0] : memref<8x256xf32, #tpu.memory_space<vmem>>, vector<8x256xf32>
    %c0_1 = arith.constant 0 : index
    %c0_2 = arith.constant 0 : index
    %1 = vector.load %arg4[%c0_1, %c0_2] : memref<8x20xf32, #tpu.memory_space<vmem>>, vector<8x1xf32>
    %c0_3 = arith.constant 0 : index
    %c1 = arith.constant 1 : index
    %2 = vector.load %arg4[%c0_3, %c1] : memref<8x20xf32, #tpu.memory_space<vmem>>, vector<8x1xf32>
    %c0_4 = arith.constant 0 : index
    %c2 = arith.constant 2 : index
    %3 = vector.load %arg4[%c0_4, %c2] : memref<8x20xf32, #tpu.memory_space<vmem>>, vector<8x1xf32>
    %c0_5 = arith.constant 0 : index
    %c3 = arith.constant 3 : index
    %4 = vector.load %arg4[%c0_5, %c3] : memref<8x20xf32, #tpu.memory_space<vmem>>, vector<8x1xf32>
    %5 = vector.broadcast %1 : vector<8x1xf32> to vector<8x256xf32>
    %6 = arith.subf %0, %5 : vector<8x256xf32>
    %7 = vector.broadcast %2 : vector<8x1xf32> to vector<8x256xf32>
    %8 = arith.mulf %7, %6 : vector<8x256xf32>
    %cst = arith.constant 0.000000e+00 : f32
    %9 = vector.broadcast %cst : f32 to vector<8x256xf32>
    %10 = math.cos %8 : vector<8x256xf32>
    %11 = math.sin %8 : vector<8x256xf32>
    %cst_6 = arith.constant 1.000000e+00 : f32
    %12 = vector.broadcast %cst_6 : f32 to vector<8x256xf32>
    %cst_7 = arith.constant 0.000000e+00 : f32
    %13 = vector.broadcast %cst_7 : f32 to vector<8x256xf32>
    %c0_8 = arith.constant 0 : index
    %c4 = arith.constant 4 : index
    %14 = vector.load %arg4[%c0_8, %c4] : memref<8x20xf32, #tpu.memory_space<vmem>>, vector<8x1xf32>
    %15 = vector.broadcast %14 : vector<8x1xf32> to vector<8x256xf32>
    %16 = arith.mulf %15, %12 : vector<8x256xf32>
    %17 = arith.addf %9, %16 : vector<8x256xf32>
    %c0_9 = arith.constant 0 : index
    %c12 = arith.constant 12 : index
    %18 = vector.load %arg4[%c0_9, %c12] : memref<8x20xf32, #tpu.memory_space<vmem>>, vector<8x1xf32>
    %19 = vector.broadcast %18 : vector<8x1xf32> to vector<8x256xf32>
    %20 = arith.mulf %19, %13 : vector<8x256xf32>
    %21 = arith.addf %17, %20 : vector<8x256xf32>
    %22 = arith.mulf %12, %10 : vector<8x256xf32>
    %23 = arith.mulf %13, %11 : vector<8x256xf32>
    %24 = arith.subf %22, %23 : vector<8x256xf32>
    %25 = arith.mulf %13, %10 : vector<8x256xf32>
    %26 = arith.mulf %12, %11 : vector<8x256xf32>
    %27 = arith.addf %25, %26 : vector<8x256xf32>
    %c0_10 = arith.constant 0 : index
    %c5 = arith.constant 5 : index
    %28 = vector.load %arg4[%c0_10, %c5] : memref<8x20xf32, #tpu.memory_space<vmem>>, vector<8x1xf32>
    %29 = vector.broadcast %28 : vector<8x1xf32> to vector<8x256xf32>
    %30 = arith.mulf %29, %24 : vector<8x256xf32>
    %31 = arith.addf %21, %30 : vector<8x256xf32>
    %c0_11 = arith.constant 0 : index
    %c13 = arith.constant 13 : index
    %32 = vector.load %arg4[%c0_11, %c13] : memref<8x20xf32, #tpu.memory_space<vmem>>, vector<8x1xf32>
    %33 = vector.broadcast %32 : vector<8x1xf32> to vector<8x256xf32>
    %34 = arith.mulf %33, %27 : vector<8x256xf32>
    %35 = arith.addf %31, %34 : vector<8x256xf32>
    %36 = arith.mulf %24, %10 : vector<8x256xf32>
    %37 = arith.mulf %27, %11 : vector<8x256xf32>
    %38 = arith.subf %36, %37 : vector<8x256xf32>
    %39 = arith.mulf %27, %10 : vector<8x256xf32>
    %40 = arith.mulf %24, %11 : vector<8x256xf32>
    %41 = arith.addf %39, %40 : vector<8x256xf32>
    %c0_12 = arith.constant 0 : index
    %c6 = arith.constant 6 : index
    %42 = vector.load %arg4[%c0_12, %c6] : memref<8x20xf32, #tpu.memory_space<vmem>>, vector<8x1xf32>
    %43 = vector.broadcast %42 : vector<8x1xf32> to vector<8x256xf32>
    %44 = arith.mulf %43, %38 : vector<8x256xf32>
    %45 = arith.addf %35, %44 : vector<8x256xf32>
    %c0_13 = arith.constant 0 : index
    %c14 = arith.constant 14 : index
    %46 = vector.load %arg4[%c0_13, %c14] : memref<8x20xf32, #tpu.memory_space<vmem>>, vector<8x1xf32>
    %47 = vector.broadcast %46 : vector<8x1xf32> to vector<8x256xf32>
    %48 = arith.mulf %47, %41 : vector<8x256xf32>
    %49 = arith.addf %45, %48 : vector<8x256xf32>
    %50 = arith.mulf %38, %10 : vector<8x256xf32>
    %51 = arith.mulf %41, %11 : vector<8x256xf32>
    %52 = arith.subf %50, %51 : vector<8x256xf32>
    %53 = arith.mulf %41, %10 : vector<8x256xf32>
    %54 = arith.mulf %38, %11 : vector<8x256xf32>
    %55 = arith.addf %53, %54 : vector<8x256xf32>
    %c0_14 = arith.constant 0 : index
    %c7 = arith.constant 7 : index
    %56 = vector.load %arg4[%c0_14, %c7] : memref<8x20xf32, #tpu.memory_space<vmem>>, vector<8x1xf32>
    %57 = vector.broadcast %56 : vector<8x1xf32> to vector<8x256xf32>
    %58 = arith.mulf %57, %52 : vector<8x256xf32>
    %59 = arith.addf %49, %58 : vector<8x256xf32>
    %c0_15 = arith.constant 0 : index
    %c15 = arith.constant 15 : index
    %60 = vector.load %arg4[%c0_15, %c15] : memref<8x20xf32, #tpu.memory_space<vmem>>, vector<8x1xf32>
    %61 = vector.broadcast %60 : vector<8x1xf32> to vector<8x256xf32>
    %62 = arith.mulf %61, %55 : vector<8x256xf32>
    %63 = arith.addf %59, %62 : vector<8x256xf32>
    %64 = arith.mulf %52, %10 : vector<8x256xf32>
    %65 = arith.mulf %55, %11 : vector<8x256xf32>
    %66 = arith.subf %64, %65 : vector<8x256xf32>
    %67 = arith.mulf %55, %10 : vector<8x256xf32>
    %68 = arith.mulf %52, %11 : vector<8x256xf32>
    %69 = arith.addf %67, %68 : vector<8x256xf32>
    %c0_16 = arith.constant 0 : index
    %c8 = arith.constant 8 : index
    %70 = vector.load %arg4[%c0_16, %c8] : memref<8x20xf32, #tpu.memory_space<vmem>>, vector<8x1xf32>
    %71 = vector.broadcast %70 : vector<8x1xf32> to vector<8x256xf32>
    %72 = arith.mulf %71, %66 : vector<8x256xf32>
    %73 = arith.addf %63, %72 : vector<8x256xf32>
    %c0_17 = arith.constant 0 : index
    %c16 = arith.constant 16 : index
    %74 = vector.load %arg4[%c0_17, %c16] : memref<8x20xf32, #tpu.memory_space<vmem>>, vector<8x1xf32>
    %75 = vector.broadcast %74 : vector<8x1xf32> to vector<8x256xf32>
    %76 = arith.mulf %75, %69 : vector<8x256xf32>
    %77 = arith.addf %73, %76 : vector<8x256xf32>
    %78 = arith.mulf %66, %10 : vector<8x256xf32>
    %79 = arith.mulf %69, %11 : vector<8x256xf32>
    %80 = arith.subf %78, %79 : vector<8x256xf32>
    %81 = arith.mulf %69, %10 : vector<8x256xf32>
    %82 = arith.mulf %66, %11 : vector<8x256xf32>
    %83 = arith.addf %81, %82 : vector<8x256xf32>
    %c0_18 = arith.constant 0 : index
    %c9 = arith.constant 9 : index
    %84 = vector.load %arg4[%c0_18, %c9] : memref<8x20xf32, #tpu.memory_space<vmem>>, vector<8x1xf32>
    %85 = vector.broadcast %84 : vector<8x1xf32> to vector<8x256xf32>
    %86 = arith.mulf %85, %80 : vector<8x256xf32>
    %87 = arith.addf %77, %86 : vector<8x256xf32>
    %c0_19 = arith.constant 0 : index
    %c17 = arith.constant 17 : index
    %88 = vector.load %arg4[%c0_19, %c17] : memref<8x20xf32, #tpu.memory_space<vmem>>, vector<8x1xf32>
    %89 = vector.broadcast %88 : vector<8x1xf32> to vector<8x256xf32>
    %90 = arith.mulf %89, %83 : vector<8x256xf32>
    %91 = arith.addf %87, %90 : vector<8x256xf32>
    %92 = arith.mulf %80, %10 : vector<8x256xf32>
    %93 = arith.mulf %83, %11 : vector<8x256xf32>
    %94 = arith.subf %92, %93 : vector<8x256xf32>
    %95 = arith.mulf %83, %10 : vector<8x256xf32>
    %96 = arith.mulf %80, %11 : vector<8x256xf32>
    %97 = arith.addf %95, %96 : vector<8x256xf32>
    %c0_20 = arith.constant 0 : index
    %c10 = arith.constant 10 : index
    %98 = vector.load %arg4[%c0_20, %c10] : memref<8x20xf32, #tpu.memory_space<vmem>>, vector<8x1xf32>
    %99 = vector.broadcast %98 : vector<8x1xf32> to vector<8x256xf32>
    %100 = arith.mulf %99, %94 : vector<8x256xf32>
    %101 = arith.addf %91, %100 : vector<8x256xf32>
    %c0_21 = arith.constant 0 : index
    %c18 = arith.constant 18 : index
    %102 = vector.load %arg4[%c0_21, %c18] : memref<8x20xf32, #tpu.memory_space<vmem>>, vector<8x1xf32>
    %103 = vector.broadcast %102 : vector<8x1xf32> to vector<8x256xf32>
    %104 = arith.mulf %103, %97 : vector<8x256xf32>
    %105 = arith.addf %101, %104 : vector<8x256xf32>
    %106 = arith.mulf %94, %10 : vector<8x256xf32>
    %107 = arith.mulf %97, %11 : vector<8x256xf32>
    %108 = arith.subf %106, %107 : vector<8x256xf32>
    %109 = arith.mulf %97, %10 : vector<8x256xf32>
    %110 = arith.mulf %94, %11 : vector<8x256xf32>
    %111 = arith.addf %109, %110 : vector<8x256xf32>
    %c0_22 = arith.constant 0 : index
    %c11 = arith.constant 11 : index
    %112 = vector.load %arg4[%c0_22, %c11] : memref<8x20xf32, #tpu.memory_space<vmem>>, vector<8x1xf32>
    %113 = vector.broadcast %112 : vector<8x1xf32> to vector<8x256xf32>
    %114 = arith.mulf %113, %108 : vector<8x256xf32>
    %115 = arith.addf %105, %114 : vector<8x256xf32>
    %c0_23 = arith.constant 0 : index
    %c19 = arith.constant 19 : index
    %116 = vector.load %arg4[%c0_23, %c19] : memref<8x20xf32, #tpu.memory_space<vmem>>, vector<8x1xf32>
    %117 = vector.broadcast %116 : vector<8x1xf32> to vector<8x256xf32>
    %118 = arith.mulf %117, %111 : vector<8x256xf32>
    %119 = arith.addf %115, %118 : vector<8x256xf32>
    %cst_24 = arith.constant dense<0x7F800000> : vector<8xf32>
    %120 = vector.multi_reduction <minimumf>, %119, %cst_24 [1] : vector<8x256xf32> to vector<8xf32>
    %121 = vector.shape_cast %120 : vector<8xf32> to vector<8x1xf32>
    %cst_25 = arith.constant dense<0xFF800000> : vector<8xf32>
    %122 = vector.multi_reduction <maximumf>, %119, %cst_25 [1] : vector<8x256xf32> to vector<8xf32>
    %123 = vector.shape_cast %122 : vector<8xf32> to vector<8x1xf32>
    %124 = arith.subf %123, %121 : vector<8x1xf32>
    %cst_26 = arith.constant 9.99999993E-9 : f32
    %125 = vector.broadcast %cst_26 : f32 to vector<8x1xf32>
    %126 = arith.addf %124, %125 : vector<8x1xf32>
    %cst_27 = arith.constant 1.000000e+00 : f32
    %127 = vector.broadcast %cst_27 : f32 to vector<8x1xf32>
    %128 = arith.divf %127, %126 : vector<8x1xf32>
    %129 = vector.broadcast %121 : vector<8x1xf32> to vector<8x256xf32>
    %130 = arith.subf %119, %129 : vector<8x256xf32>
    %131 = vector.broadcast %128 : vector<8x1xf32> to vector<8x256xf32>
    %132 = arith.mulf %130, %131 : vector<8x256xf32>
    %cst_28 = arith.constant 0.000000e+00 : f32
    %133 = vector.broadcast %cst_28 : f32 to vector<8x256xf32>
    %134 = arith.addf %132, %133 : vector<8x256xf32>
    %cst_29 = arith.constant 1.000000e-01 : f32
    %135 = vector.broadcast %cst_29 : f32 to vector<8x256xf32>
    %136 = arith.maximumf %134, %135 : vector<8x256xf32>
    %137 = vector.broadcast %3 : vector<8x1xf32> to vector<8x256xf32>
    %138 = arith.cmpf olt, %0, %137 : vector<8x256xf32>
    %139 = vector.broadcast %4 : vector<8x1xf32> to vector<8x256xf32>
    %140 = arith.cmpf ogt, %0, %139 : vector<8x256xf32>
    %141 = arith.ori %138, %140 : vector<8x256xi1>
    %cst_30 = arith.constant 0.000000e+00 : f32
    %142 = vector.broadcast %cst_30 : f32 to vector<8x256xf32>
    %143 = arith.select %141, %142, %136 : vector<8x256xi1>, vector<8x256xf32>
    %c0_31 = arith.constant 0 : index
    %c0_32 = arith.constant 0 : index
    %144 = vector.load %arg5[%c0_31, %c0_32] : memref<8x256xf32, #tpu.memory_space<vmem>>, vector<8x256xf32>
    tpu.vector_store %arg5[%c0_31, %c0_32], %143 {strides = array<i32>} : memref<8x256xf32, #tpu.memory_space<vmem>>, vector<8x256xf32>,
    return
  }
  func.func @transform_0(%arg0: i32, %arg1: i32, %arg2: i32) -> (i32, i32) {
    %c0_i32 = arith.constant 0 : i32
    return %arg0, %arg2 : i32, i32
  }
  func.func @transform_1(%arg0: i32, %arg1: i32, %arg2: i32) -> (i32, i32) {
    %c0_i32 = arith.constant 0 : i32
    %c0_i32_0 = arith.constant 0 : i32
    return %arg0, %c0_i32 : i32, i32
  }
  func.func @transform_2(%arg0: i32, %arg1: i32, %arg2: i32) -> (i32, i32) {
    %c0_i32 = arith.constant 0 : i32
    return %arg0, %arg2 : i32, i32
  }
}

</mosaic_0001>

<llo_original>
// kernel: tpu_custom_call.1
$region0: #{tpu_custom_call.1}
  #allocation0 [shape = 'u32[]', space=smem, size = 0x4, offset = 0x4, fixed_abs, tag = 'smem constant byte address 0x4 - core index']
  #allocation1 [shape = 'u32[144,128]{1,0:T(1,128)}', space=vmem, size = 0x12000, scoped, tag = 'internal scratch']
  #allocation2 [shape = 'f32[8,1]{1,0:T(8,128)}', space=vmem, size = 0x1000, scoped, tag = 'scratch operand']
  #allocation3 [shape = 'f32[8,1]{1,0:T(8,128)}', space=vmem, size = 0x1000, scoped, tag = 'scratch operand']
  %s0 = inlined_call_operand.hbm [shape: f32[8,256], index: 0, kind: input, shape index: {}]
  %s1 = inlined_call_operand.hbm [shape: f32[8,20], index: 1, kind: input, shape index: {}]
  %s2 = inlined_call_operand.hbm [shape: f32[8,256], index: 2, kind: output, shape index: {}]
  %s3 = sld [smem:[#allocation0]]
  $region26: #{tpu_custom_call.1} parent=0
    _
  %s5 = ssub.s32 1, %s3
  %s6 = scalar_select 0, %s5, %s3
  $region1: #{tpu_custom_call.1} parent=0
    #allocation4 [shape = 'u8[8192]{0}', space=vmem, size = 0x2000, scoped, tag = 'input window, operand 0, single buffered']
    #allocation5 [shape = 's32[1]{0}', space=sflag, size = 0x4, scoped, tag = 'scoped memory for tpu_custom_call.1']
    #allocation6 [shape = 's32[1]{0}', space=sflag, size = 0x4, scoped, tag = 'scoped memory for tpu_custom_call.1']
    #allocation7 [shape = 'u8[4096]{0}', space=vmem, size = 0x1000, scoped, tag = 'input window, operand 1, single buffered']
    #allocation8 [shape = 's32[1]{0}', space=sflag, size = 0x4, scoped, tag = 'scoped memory for tpu_custom_call.1']
    #allocation9 [shape = 'u8[8192]{0}', space=vmem, size = 0x2000, scoped, tag = 'output window, operand 0, single buffered']
    %7 = vsyncpa [#allocation5], 0
    %8 = vsyncpa [#allocation8], 0
    %9 = vsyncpa [#allocation6], 0
    // Predicated region
    $region2: #{tpu_custom_call.1} parent=1 // pred_check
      _
    $region3: #{tpu_custom_call.1} parent=1 // pred_check_branch
      %11 = sbr.rel (0) target = $region5
    $region4: #{tpu_custom_call.1} parent=1 // pred_region
      %s13 = ssub.s32 256, 256
      %14 = vsyncadd [#allocation5], %s13
      %s16 = sshll.u32 [#allocation4], 4
      %s17 = int_to_ptr.vmem [resolvable:$true] %s16
      %19 = dma.hbm_to_vmem [thread:$0]  %s0, 256, %s17, [#allocation5]
    $region5: #{tpu_custom_call.1} parent=1 // pred_fallthru
      _
    // Predicated region
    $region6: #{tpu_custom_call.1} parent=1 // pred_check
      _
    $region7: #{tpu_custom_call.1} parent=1 // pred_check_branch
      %21 = sbr.rel (0) target = $region9
    $region8: #{tpu_custom_call.1} parent=1 // pred_region
      %s23 = ssub.s32 128, 128
      %24 = vsyncadd [#allocation8], %s23
      %s26 = sshll.u32 [#allocation7], 4
      %s27 = int_to_ptr.vmem [resolvable:$true] %s26
      %29 = dma.hbm_to_vmem [thread:$0]  %s1, 128, %s27, [#allocation8]
    $region9: #{tpu_custom_call.1} parent=1 // pred_fallthru
      _
    // Predicated region
    $region10: #{tpu_custom_call.1} parent=1 // pred_check
      _
    $region11: #{tpu_custom_call.1} parent=1 // pred_check_branch
      %31 = sbr.rel (0) target = $region13
    $region12: #{tpu_custom_call.1} parent=1 // pred_region
      %32 = dma.done [#allocation5], 256
    $region13: #{tpu_custom_call.1} parent=1 // pred_fallthru
      _
    // Predicated region
    $region14: #{tpu_custom_call.1} parent=1 // pred_check
      _
    $region15: #{tpu_custom_call.1} parent=1 // pred_check_branch
      %34 = sbr.rel (0) target = $region17
    $region16: #{tpu_custom_call.1} parent=1 // pred_region
      %35 = dma.done [#allocation8], 128
    $region17: #{tpu_custom_call.1} parent=1 // pred_fallthru
      _
    %v36 = vld [vmem:[#allocation4] sm:$0xff]
    %v37 = vld [vmem:[#allocation4 + $0x8] sm:$0xff]
    %v38 = vld [vmem:[#allocation7] sm:$0xff]
    %40 = vset.pattern.permute.xlu0 0
    %41 = vperm.xlu0 %40, %v38
    %v42 = vpop.permute.xlu0 %41
    %v44 = vsub.f32 %v36, %v42
    %v45 = vsub.f32 %v37, %v42
    %46 = vset.pattern.permute.xlu0 1
    %47 = vperm.xlu0 %46, %v38
    %v48 = vpop.permute.xlu0 %47
    %v50 = vmul.f32 %v48, %v44
    %v51 = vmul.f32 %v48, %v45
    %v52 = vand.u32 2147483647, %v50
    %vm53 = vcmp.le.f32.partialorder %v52, 0.7853982
    %vm54 = vcmp.lt.s32.totalorder %v50, 0
    %v55 = vand.u32 %v50, 2139095040
    %v56 = vshrl.u32 %v55, 23
    %v57 = vsub.s32 %v56, 127
    %v58 = vand.u32 2147483647, %v50
    %v59 = vand.u32 %v58, 8388607
    %v60 = vor.u32 %v59, 8388608
    %v61 = vsub.s32 0, %v60
    %v62 = vadd.s32 %v57, 1
    %vm63 = vcmp.gt.s32.totalorder %v62, 0
    %v64 = vsel %vm63, %v62, 0
    %v65 = vshrl.u32 %v64, 5
    %v66 = vand.u32 %v64, 31
    %v67 = vsub.s32 32, %v66
    %v68 = vshrl.u32 683565275, %v67
    %v69 = vshll.u32 683565275, %v66
    %v70 = vshrl.u32 2475754826, %v67
    %v71 = vor.u32 %v69, %v70
    %v72 = vshll.u32 2475754826, %v66
    %v73 = vshrl.u32 2131351028, %v67
    %v74 = vor.u32 %v72, %v73
    %v75 = vshll.u32 2131351028, %v66
    %v76 = vshrl.u32 2102212464, %v67
    %v77 = vor.u32 %v75, %v76
    %v78 = vshll.u32 2102212464, %v66
    %v79 = vshrl.u32 920167782, %v67
    %v80 = vor.u32 %v78, %v79
    %v81 = vshll.u32 920167782, %v66
    %v82 = vshrl.u32 1326507024, %v67
    %v83 = vor.u32 %v81, %v82
    %vm84 = vcmp.lt.s32.totalorder %v65, 1
    %vm85 = vcmp.lt.s32.totalorder %v65, 2
    %vm86 = vcmp.lt.s32.totalorder %v65, 3
    %vm87 = vcmp.lt.s32.totalorder %v65, 4
    %v88 = vsel %vm84, %v68, %v71
    %v89 = vsel %vm87, %v77, 2102212464
    %v90 = vsel %vm86, %v74, %v89
    %v91 = vsel %vm85, %v88, %v90
    %v92 = vsel %vm84, %v71, %v74
    %v93 = vsel %vm87, %v80, 920167782
    %v94 = vsel %vm86, %v77, %v93
    %v95 = vsel %vm85, %v92, %v94
    %v96 = vsel %vm84, %v74, %v77
    %v97 = vsel %vm87, %v83, 1326507024
    %v98 = vsel %vm86, %v80, %v97
    %v99 = vsel %vm85, %v96, %v98
    %v100 = vshll.u32 %v60, 8
    %v101 = vmul.u32.u64.compose %v100, %v99
    %v102 = vextract.low.u32 %v101
    %v103 = vextract.high.u32 %v101
    %v104 = vmul.u32.u64.compose %v100, %v95
    %v105 = vextract.low.u32 %v104
    %v106 = vextract.high.u32 %v104
    %v107 = vmul.u32 %v100, %v91
    %v108 = vadd.s32 %v103, %v105
    %vm109 = vc.u32 %v103, %v105
    %v110 = vadd.s32 %v106, 1
    %v111 = vsel %vm109, %v110, %v106
    %v112 = vadd.s32 %v107, %v111
    %v113 = vadd.s32 %v112, 536870912
    %v114 = vshrl.u32 %v113, 30
    %v115 = vshll.u32 %v114, 30
    %v116 = vsub.s32 %v112, %v115
    %vm117 = vcmp.lt.s32.totalorder %v116, 0
    %v118 = vsub.s32 0, %v116
    %v119 = vsel %vm117, %v118, %v116
    %v120 = vclz %v119
    %v121 = vsub.s32 %v120, 2
    %vm122 = vcmp.gt.s32.totalorder 0, %v121
    %v123 = vsel %vm122, 0, %v121
    %v124 = vsub.s32 32, %v123
    %v125 = vshll.u32 %v116, %v123
    %v126 = vshrl.u32 %v108, %v124
    %v127 = vor.u32 %v125, %v126
    %v128 = vsub.s32 4294967266, %v123
    %v129 = vadd.s32 %v128, 127
    %v130 = vshll.u32 %v129, 23
    %v131 = vor.u32 4788187, %v130
    %v132 = vand.u32 2147483647, %v131
    %v134 = vcvt.s32.f32 %v127
    %v135 = vmul.f32 %v134, %v132
    %v136 = vxor.u32 %v135, 2147483648
    %v137 = vsel %vm54, %v136, %v135
    %v138 = vsub.s32 4, %v114
    %v139 = vsel %vm54, %v138, %v114
    %v140 = vsel %vm53, %v50, %v137
    %v141 = vsel %vm53, 0, %v139
    %v142 = vcosq.f32.pop %v140
    %v143 = vsinq.f32.pop %v140
    %vm144 = vweird.f32 %v50
    %v145 = vand.u32 %v141, 3
    %vm146 = vcmp.lt.s32.totalorder %v145, 2
    %vm147 = vcmp.eq.s32.totalorder %v145, 0
    %v148 = vxor.u32 %v143, 2147483648
    %v149 = vsel %vm147, %v142, %v148
    %vm150 = vcmp.eq.s32.totalorder %v145, 2
    %v151 = vxor.u32 %v142, 2147483648
    %v152 = vsel %vm150, %v151, %v143
    %v153 = vsel %vm146, %v149, %v152
    %v154 = vsel %vm144, nan, %v153
    %v155 = vand.u32 2147483647, %v51
    %vm156 = vcmp.le.f32.partialorder %v155, 0.7853982
    %vm157 = vcmp.lt.s32.totalorder %v51, 0
    %v158 = vand.u32 %v51, 2139095040
    %v159 = vshrl.u32 %v158, 23
    %v160 = vsub.s32 %v159, 127
    %v161 = vand.u32 2147483647, %v51
    %v162 = vand.u32 %v161, 8388607
    %v163 = vor.u32 %v162, 8388608
    %v164 = vsub.s32 0, %v163
    %v165 = vadd.s32 %v160, 1
    %vm166 = vcmp.gt.s32.totalorder %v165, 0
    %v167 = vsel %vm166, %v165, 0
    %v168 = vshrl.u32 %v167, 5
    %v169 = vand.u32 %v167, 31
    %v170 = vsub.s32 32, %v169
    %v171 = vshrl.u32 683565275, %v170
    %v172 = vshll.u32 683565275, %v169
    %v173 = vshrl.u32 2475754826, %v170
    %v174 = vor.u32 %v172, %v173
    %v175 = vshll.u32 2475754826, %v169
    %v176 = vshrl.u32 2131351028, %v170
    %v177 = vor.u32 %v175, %v176
    %v178 = vshll.u32 2131351028, %v169
    %v179 = vshrl.u32 2102212464, %v170
    %v180 = vor.u32 %v178, %v179
    %v181 = vshll.u32 2102212464, %v169
    %v182 = vshrl.u32 920167782, %v170
    %v183 = vor.u32 %v181, %v182
    %v184 = vshll.u32 920167782, %v169
    %v185 = vshrl.u32 1326507024, %v170
    %v186 = vor.u32 %v184, %v185
    %vm187 = vcmp.lt.s32.totalorder %v168, 1
    %vm188 = vcmp.lt.s32.totalorder %v168, 2
    %vm189 = vcmp.lt.s32.totalorder %v168, 3
    %vm190 = vcmp.lt.s32.totalorder %v168, 4
    %v191 = vsel %vm187, %v171, %v174
    %v192 = vsel %vm190, %v180, 2102212464
    %v193 = vsel %vm189, %v177, %v192
    %v194 = vsel %vm188, %v191, %v193
    %v195 = vsel %vm187, %v174, %v177
    %v196 = vsel %vm190, %v183, 920167782
    %v197 = vsel %vm189, %v180, %v196
    %v198 = vsel %vm188, %v195, %v197
    %v199 = vsel %vm187, %v177, %v180
    %v200 = vsel %vm190, %v186, 1326507024
    %v201 = vsel %vm189, %v183, %v200
    %v202 = vsel %vm188, %v199, %v201
    %v203 = vshll.u32 %v163, 8
    %v204 = vmul.u32.u64.compose %v203, %v202
    %v205 = vextract.low.u32 %v204
    %v206 = vextract.high.u32 %v204
    %v207 = vmul.u32.u64.compose %v203, %v198
    %v208 = vextract.low.u32 %v207
    %v209 = vextract.high.u32 %v207
    %v210 = vmul.u32 %v203, %v194
    %v211 = vadd.s32 %v206, %v208
    %vm212 = vc.u32 %v206, %v208
    %v213 = vadd.s32 %v209, 1
    %v214 = vsel %vm212, %v213, %v209
    %v215 = vadd.s32 %v210, %v214
    %v216 = vadd.s32 %v215, 536870912
    %v217 = vshrl.u32 %v216, 30
    %v218 = vshll.u32 %v217, 30
    %v219 = vsub.s32 %v215, %v218
    %vm220 = vcmp.lt.s32.totalorder %v219, 0
    %v221 = vsub.s32 0, %v219
    %v222 = vsel %vm220, %v221, %v219
    %v223 = vclz %v222
    %v224 = vsub.s32 %v223, 2
    %vm225 = vcmp.gt.s32.totalorder 0, %v224
    %v226 = vsel %vm225, 0, %v224
    %v227 = vsub.s32 32, %v226
    %v228 = vshll.u32 %v219, %v226
    %v229 = vshrl.u32 %v211, %v227
    %v230 = vor.u32 %v228, %v229
    %v231 = vsub.s32 4294967266, %v226
    %v232 = vadd.s32 %v231, 127
    %v233 = vshll.u32 %v232, 23
    %v234 = vor.u32 4788187, %v233
    %v235 = vand.u32 2147483647, %v234
    %v237 = vcvt.s32.f32 %v230
    %v238 = vmul.f32 %v237, %v235
    %v239 = vxor.u32 %v238, 2147483648
    %v240 = vsel %vm157, %v239, %v238
    %v241 = vsub.s32 4, %v217
    %v242 = vsel %vm157, %v241, %v217
    %v243 = vsel %vm156, %v51, %v240
    %v244 = vsel %vm156, 0, %v242
    %v245 = vcosq.f32.pop %v243
    %v246 = vsinq.f32.pop %v243
    %vm247 = vweird.f32 %v51
    %v248 = vand.u32 %v244, 3
    %vm249 = vcmp.lt.s32.totalorder %v248, 2
    %vm250 = vcmp.eq.s32.totalorder %v248, 0
    %v251 = vxor.u32 %v246, 2147483648
    %v252 = vsel %vm250, %v245, %v251
    %vm253 = vcmp.eq.s32.totalorder %v248, 2
    %v254 = vxor.u32 %v245, 2147483648
    %v255 = vsel %vm253, %v254, %v246
    %v256 = vsel %vm249, %v252, %v255
    %v257 = vsel %vm247, nan, %v256
    %v258 = vand.u32 2147483647, %v50
    %vm259 = vcmp.le.f32.partialorder %v258, 0.7853982
    %vm260 = vcmp.lt.s32.totalorder %v50, 0
    %v261 = vand.u32 %v50, 2139095040
    %v262 = vshrl.u32 %v261, 23
    %v263 = vsub.s32 %v262, 127
    %v264 = vand.u32 2147483647, %v50
    %v265 = vand.u32 %v264, 8388607
    %v266 = vor.u32 %v265, 8388608
    %v267 = vsub.s32 0, %v266
    %v268 = vadd.s32 %v263, 1
    %vm269 = vcmp.gt.s32.totalorder %v268, 0
    %v270 = vsel %vm269, %v268, 0
    %v271 = vshrl.u32 %v270, 5
    %v272 = vand.u32 %v270, 31
    %v273 = vsub.s32 32, %v272
    %v274 = vshrl.u32 683565275, %v273
    %v275 = vshll.u32 683565275, %v272
    %v276 = vshrl.u32 2475754826, %v273
    %v277 = vor.u32 %v275, %v276
    %v278 = vshll.u32 2475754826, %v272
    %v279 = vshrl.u32 2131351028, %v273
    %v280 = vor.u32 %v278, %v279
    %v281 = vshll.u32 2131351028, %v272
    %v282 = vshrl.u32 2102212464, %v273
    %v283 = vor.u32 %v281, %v282
    %v284 = vshll.u32 2102212464, %v272
    %v285 = vshrl.u32 920167782, %v273
    %v286 = vor.u32 %v284, %v285
    %v287 = vshll.u32 920167782, %v272
    %v288 = vshrl.u32 1326507024, %v273
    %v289 = vor.u32 %v287, %v288
    %vm290 = vcmp.lt.s32.totalorder %v271, 1
    %vm291 = vcmp.lt.s32.totalorder %v271, 2
    %vm292 = vcmp.lt.s32.totalorder %v271, 3
    %vm293 = vcmp.lt.s32.totalorder %v271, 4
    %v294 = vsel %vm290, %v274, %v277
    %v295 = vsel %vm293, %v283, 2102212464
    %v296 = vsel %vm292, %v280, %v295
    %v297 = vsel %vm291, %v294, %v296
    %v298 = vsel %vm290, %v277, %v280
    %v299 = vsel %vm293, %v286, 920167782
    %v300 = vsel %vm292, %v283, %v299
    %v301 = vsel %vm291, %v298, %v300
    %v302 = vsel %vm290, %v280, %v283
    %v303 = vsel %vm293, %v289, 1326507024
    %v304 = vsel %vm292, %v286, %v303
    %v305 = vsel %vm291, %v302, %v304
    %v306 = vshll.u32 %v266, 8
    %v307 = vmul.u32.u64.compose %v306, %v305
    %v308 = vextract.low.u32 %v307
    %v309 = vextract.high.u32 %v307
    %v310 = vmul.u32.u64.compose %v306, %v301
    %v311 = vextract.low.u32 %v310
    %v312 = vextract.high.u32 %v310
    %v313 = vmul.u32 %v306, %v297
    %v314 = vadd.s32 %v309, %v311
    %vm315 = vc.u32 %v309, %v311
    %v316 = vadd.s32 %v312, 1
    %v317 = vsel %vm315, %v316, %v312
    %v318 = vadd.s32 %v313, %v317
    %v319 = vadd.s32 %v318, 536870912
    %v320 = vshrl.u32 %v319, 30
    %v321 = vshll.u32 %v320, 30
    %v322 = vsub.s32 %v318, %v321
    %vm323 = vcmp.lt.s32.totalorder %v322, 0
    %v324 = vsub.s32 0, %v322
    %v325 = vsel %vm323, %v324, %v322
    %v326 = vclz %v325
    %v327 = vsub.s32 %v326, 2
    %vm328 = vcmp.gt.s32.totalorder 0, %v327
    %v329 = vsel %vm328, 0, %v327
    %v330 = vsub.s32 32, %v329
    %v331 = vshll.u32 %v322, %v329
    %v332 = vshrl.u32 %v314, %v330
    %v333 = vor.u32 %v331, %v332
    %v334 = vsub.s32 4294967266, %v329
    %v335 = vadd.s32 %v334, 127
    %v336 = vshll.u32 %v335, 23
    %v337 = vor.u32 4788187, %v336
    %v338 = vand.u32 2147483647, %v337
    %v340 = vcvt.s32.f32 %v333
    %v341 = vmul.f32 %v340, %v338
    %v342 = vxor.u32 %v341, 2147483648
    %v343 = vsel %vm260, %v342, %v341
    %v344 = vsub.s32 4, %v320
    %v345 = vsel %vm260, %v344, %v320
    %v346 = vsel %vm259, %v50, %v343
    %v347 = vsel %vm259, 0, %v345
    %v348 = vcosq.f32.pop %v346
    %v349 = vsinq.f32.pop %v346
    %vm350 = vweird.f32 %v50
    %v351 = vadd.s32 %v347, 3
    %v352 = vand.u32 %v351, 3
    %vm353 = vcmp.lt.s32.totalorder %v352, 2
    %vm354 = vcmp.eq.s32.totalorder %v352, 0
    %v355 = vxor.u32 %v349, 2147483648
    %v356 = vsel %vm354, %v348, %v355
    %vm357 = vcmp.eq.s32.totalorder %v352, 2
    %v358 = vxor.u32 %v348, 2147483648
    %v359 = vsel %vm357, %v358, %v349
    %v360 = vsel %vm353, %v356, %v359
    %v361 = vsel %vm350, nan, %v360
    %v362 = vand.u32 2147483647, %v51
    %vm363 = vcmp.le.f32.partialorder %v362, 0.7853982
    %vm364 = vcmp.lt.s32.totalorder %v51, 0
    %v365 = vand.u32 %v51, 2139095040
    %v366 = vshrl.u32 %v365, 23
    %v367 = vsub.s32 %v366, 127
    %v368 = vand.u32 2147483647, %v51
    %v369 = vand.u32 %v368, 8388607
    %v370 = vor.u32 %v369, 8388608
    %v371 = vsub.s32 0, %v370
    %v372 = vadd.s32 %v367, 1
    %vm373 = vcmp.gt.s32.totalorder %v372, 0
    %v374 = vsel %vm373, %v372, 0
    %v375 = vshrl.u32 %v374, 5
    %v376 = vand.u32 %v374, 31
    %v377 = vsub.s32 32, %v376
    %v378 = vshrl.u32 683565275, %v377
    %v379 = vshll.u32 683565275, %v376
    %v380 = vshrl.u32 2475754826, %v377
    %v381 = vor.u32 %v379, %v380
    %v382 = vshll.u32 2475754826, %v376
    %v383 = vshrl.u32 2131351028, %v377
    %v384 = vor.u32 %v382, %v383
    %v385 = vshll.u32 2131351028, %v376
    %v386 = vshrl.u32 2102212464, %v377
    %v387 = vor.u32 %v385, %v386
    %v388 = vshll.u32 2102212464, %v376
    %v389 = vshrl.u32 920167782, %v377
    %v390 = vor.u32 %v388, %v389
    %v391 = vshll.u32 920167782, %v376
    %v392 = vshrl.u32 1326507024, %v377
    %v393 = vor.u32 %v391, %v392
    %vm394 = vcmp.lt.s32.totalorder %v375, 1
    %vm395 = vcmp.lt.s32.totalorder %v375, 2
    %vm396 = vcmp.lt.s32.totalorder %v375, 3
    %vm397 = vcmp.lt.s32.totalorder %v375, 4
    %v398 = vsel %vm394, %v378, %v381
    %v399 = vsel %vm397, %v387, 2102212464
    %v400 = vsel %vm396, %v384, %v399
    %v401 = vsel %vm395, %v398, %v400
    %v402 = vsel %vm394, %v381, %v384
    %v403 = vsel %vm397, %v390, 920167782
    %v404 = vsel %vm396, %v387, %v403
    %v405 = vsel %vm395, %v402, %v404
    %v406 = vsel %vm394, %v384, %v387
    %v407 = vsel %vm397, %v393, 1326507024
    %v408 = vsel %vm396, %v390, %v407
    %v409 = vsel %vm395, %v406, %v408
    %v410 = vshll.u32 %v370, 8
    %v411 = vmul.u32.u64.compose %v410, %v409
    %v412 = vextract.low.u32 %v411
    %v413 = vextract.high.u32 %v411
    %v414 = vmul.u32.u64.compose %v410, %v405
    %v415 = vextract.low.u32 %v414
    %v416 = vextract.high.u32 %v414
    %v417 = vmul.u32 %v410, %v401
    %v418 = vadd.s32 %v413, %v415
    %vm419 = vc.u32 %v413, %v415
    %v420 = vadd.s32 %v416, 1
    %v421 = vsel %vm419, %v420, %v416
    %v422 = vadd.s32 %v417, %v421
    %v423 = vadd.s32 %v422, 536870912
    %v424 = vshrl.u32 %v423, 30
    %v425 = vshll.u32 %v424, 30
    %v426 = vsub.s32 %v422, %v425
    %vm427 = vcmp.lt.s32.totalorder %v426, 0
    %v428 = vsub.s32 0, %v426
    %v429 = vsel %vm427, %v428, %v426
    %v430 = vclz %v429
    %v431 = vsub.s32 %v430, 2
    %vm432 = vcmp.gt.s32.totalorder 0, %v431
    %v433 = vsel %vm432, 0, %v431
    %v434 = vsub.s32 32, %v433
    %v435 = vshll.u32 %v426, %v433
    %v436 = vshrl.u32 %v418, %v434
    %v437 = vor.u32 %v435, %v436
    %v438 = vsub.s32 4294967266, %v433
    %v439 = vadd.s32 %v438, 127
    %v440 = vshll.u32 %v439, 23
    %v441 = vor.u32 4788187, %v440
    %v442 = vand.u32 2147483647, %v441
    %v444 = vcvt.s32.f32 %v437
    %v445 = vmul.f32 %v444, %v442
    %v446 = vxor.u32 %v445, 2147483648
    %v447 = vsel %vm364, %v446, %v445
    %v448 = vsub.s32 4, %v424
    %v449 = vsel %vm364, %v448, %v424
    %v450 = vsel %vm363, %v51, %v447
    %v451 = vsel %vm363, 0, %v449
    %v452 = vcosq.f32.pop %v450
    %v453 = vsinq.f32.pop %v450
    %vm454 = vweird.f32 %v51
    %v455 = vadd.s32 %v451, 3
    %v456 = vand.u32 %v455, 3
    %vm457 = vcmp.lt.s32.totalorder %v456, 2
    %vm458 = vcmp.eq.s32.totalorder %v456, 0
    %v459 = vxor.u32 %v453, 2147483648
    %v460 = vsel %vm458, %v452, %v459
    %vm461 = vcmp.eq.s32.totalorder %v456, 2
    %v462 = vxor.u32 %v452, 2147483648
    %v463 = vsel %vm461, %v462, %v453
    %v464 = vsel %vm457, %v460, %v463
    %v465 = vsel %vm454, nan, %v464
    %466 = vset.pattern.permute.xlu0 4
    %467 = vperm.xlu0 %466, %v38
    %v468 = vpop.permute.xlu0 %467
    %v470 = vadd.f32 %v468, 0.0
    %471 = vset.pattern.permute.xlu0 12
    %472 = vperm.xlu0 %471, %v38
    %v473 = vpop.permute.xlu0 %472
    %v475 = vmul.f32 %v473, 0.0
    %v476 = vadd.f32 %v470, %v475
    %v477 = vmul.f32 %v361, 0.0
    %v478 = vmul.f32 %v465, 0.0
    %v479 = vsub.f32 %v154, %v477
    %v480 = vsub.f32 %v257, %v478
    %v481 = vmul.f32 %v154, 0.0
    %v482 = vmul.f32 %v257, 0.0
    %v483 = vadd.f32 %v481, %v361
    %v484 = vadd.f32 %v482, %v465
    %485 = vset.pattern.permute.xlu0 5
    %486 = vperm.xlu0 %485, %v38
    %v487 = vpop.permute.xlu0 %486
    %v489 = vmul.f32 %v487, %v479
    %v490 = vmul.f32 %v487, %v480
    %v491 = vadd.f32 %v476, %v489
    %v492 = vadd.f32 %v476, %v490
    %493 = vset.pattern.permute.xlu0 13
    %494 = vperm.xlu0 %493, %v38
    %v495 = vpop.permute.xlu0 %494
    %v497 = vmul.f32 %v495, %v483
    %v498 = vmul.f32 %v495, %v484
    %v499 = vadd.f32 %v491, %v497
    %v500 = vadd.f32 %v492, %v498
    %v501 = vmul.f32 %v479, %v154
    %v502 = vmul.f32 %v480, %v257
    %v503 = vmul.f32 %v483, %v361
    %v504 = vmul.f32 %v484, %v465
    %v505 = vsub.f32 %v501, %v503
    %v506 = vsub.f32 %v502, %v504
    %v507 = vmul.f32 %v483, %v154
    %v508 = vmul.f32 %v484, %v257
    %v509 = vmul.f32 %v479, %v361
    %v510 = vmul.f32 %v480, %v465
    %v511 = vadd.f32 %v507, %v509
    %v512 = vadd.f32 %v508, %v510
    %513 = vset.pattern.permute.xlu0 6
    %514 = vperm.xlu0 %513, %v38
    %v515 = vpop.permute.xlu0 %514
    %v517 = vmul.f32 %v515, %v505
    %v518 = vmul.f32 %v515, %v506
    %v519 = vadd.f32 %v499, %v517
    %v520 = vadd.f32 %v500, %v518
    %521 = vset.pattern.permute.xlu0 14
    %522 = vperm.xlu0 %521, %v38
    %v523 = vpop.permute.xlu0 %522
    %v525 = vmul.f32 %v523, %v511
    %v526 = vmul.f32 %v523, %v512
    %v527 = vadd.f32 %v519, %v525
    %v528 = vadd.f32 %v520, %v526
    %v529 = vmul.f32 %v505, %v154
    %v530 = vmul.f32 %v506, %v257
    %v531 = vmul.f32 %v511, %v361
    %v532 = vmul.f32 %v512, %v465
    %v533 = vsub.f32 %v529, %v531
    %v534 = vsub.f32 %v530, %v532
    %v535 = vmul.f32 %v511, %v154
    %v536 = vmul.f32 %v512, %v257
    %v537 = vmul.f32 %v505, %v361
    %v538 = vmul.f32 %v506, %v465
    %v539 = vadd.f32 %v535, %v537
    %v540 = vadd.f32 %v536, %v538
    %541 = vset.pattern.permute.xlu0 7
    %542 = vperm.xlu0 %541, %v38
    %v543 = vpop.permute.xlu0 %542
    %v545 = vmul.f32 %v543, %v533
    %v546 = vmul.f32 %v543, %v534
    %v547 = vadd.f32 %v527, %v545
    %v548 = vadd.f32 %v528, %v546
    %549 = vset.pattern.permute.xlu0 15
    %550 = vperm.xlu0 %549, %v38
    %v551 = vpop.permute.xlu0 %550
    %v553 = vmul.f32 %v551, %v539
    %v554 = vmul.f32 %v551, %v540
    %v555 = vadd.f32 %v547, %v553
    %v556 = vadd.f32 %v548, %v554
    %v557 = vmul.f32 %v533, %v154
    %v558 = vmul.f32 %v534, %v257
    %v559 = vmul.f32 %v539, %v361
    %v560 = vmul.f32 %v540, %v465
    %v561 = vsub.f32 %v557, %v559
    %v562 = vsub.f32 %v558, %v560
    %v563 = vmul.f32 %v539, %v154
    %v564 = vmul.f32 %v540, %v257
    %v565 = vmul.f32 %v533, %v361
    %v566 = vmul.f32 %v534, %v465
    %v567 = vadd.f32 %v563, %v565
    %v568 = vadd.f32 %v564, %v566
    %569 = vset.pattern.permute.xlu0 8
    %570 = vperm.xlu0 %569, %v38
    %v571 = vpop.permute.xlu0 %570
    %v573 = vmul.f32 %v571, %v561
    %v574 = vmul.f32 %v571, %v562
    %v575 = vadd.f32 %v555, %v573
    %v576 = vadd.f32 %v556, %v574
    %577 = vset.pattern.permute.xlu0 16
    %578 = vperm.xlu0 %577, %v38
    %v579 = vpop.permute.xlu0 %578
    %v581 = vmul.f32 %v579, %v567
    %v582 = vmul.f32 %v579, %v568
    %v583 = vadd.f32 %v575, %v581
    %v584 = vadd.f32 %v576, %v582
    %v585 = vmul.f32 %v561, %v154
    %v586 = vmul.f32 %v562, %v257
    %v587 = vmul.f32 %v567, %v361
    %v588 = vmul.f32 %v568, %v465
    %v589 = vsub.f32 %v585, %v587
    %v590 = vsub.f32 %v586, %v588
    %v591 = vmul.f32 %v567, %v154
    %v592 = vmul.f32 %v568, %v257
    %v593 = vmul.f32 %v561, %v361
    %v594 = vmul.f32 %v562, %v465
    %v595 = vadd.f32 %v591, %v593
    %v596 = vadd.f32 %v592, %v594
    %597 = vset.pattern.permute.xlu0 9
    %598 = vperm.xlu0 %597, %v38
    %v599 = vpop.permute.xlu0 %598
    %v601 = vmul.f32 %v599, %v589
    %v602 = vmul.f32 %v599, %v590
    %v603 = vadd.f32 %v583, %v601
    %v604 = vadd.f32 %v584, %v602
    %605 = vset.pattern.permute.xlu0 17
    %606 = vperm.xlu0 %605, %v38
    %v607 = vpop.permute.xlu0 %606
    %v609 = vmul.f32 %v607, %v595
    %v610 = vmul.f32 %v607, %v596
    %v611 = vadd.f32 %v603, %v609
    %v612 = vadd.f32 %v604, %v610
    %v613 = vmul.f32 %v589, %v154
    %v614 = vmul.f32 %v590, %v257
    %v615 = vmul.f32 %v595, %v361
    %v616 = vmul.f32 %v596, %v465
    %v617 = vsub.f32 %v613, %v615
    %v618 = vsub.f32 %v614, %v616
    %v619 = vmul.f32 %v595, %v154
    %v620 = vmul.f32 %v596, %v257
    %v621 = vmul.f32 %v589, %v361
    %v622 = vmul.f32 %v590, %v465
    %v623 = vadd.f32 %v619, %v621
    %v624 = vadd.f32 %v620, %v622
    %625 = vset.pattern.permute.xlu0 10
    %626 = vperm.xlu0 %625, %v38
    %v627 = vpop.permute.xlu0 %626
    %v629 = vmul.f32 %v627, %v617
    %v630 = vmul.f32 %v627, %v618
    %v631 = vadd.f32 %v611, %v629
    %v632 = vadd.f32 %v612, %v630
    %633 = vset.pattern.permute.xlu0 18
    %634 = vperm.xlu0 %633, %v38
    %v635 = vpop.permute.xlu0 %634
    %v637 = vmul.f32 %v635, %v623
    %v638 = vmul.f32 %v635, %v624
    %v639 = vadd.f32 %v631, %v637
    %v640 = vadd.f32 %v632, %v638
    %v641 = vmul.f32 %v617, %v154
    %v642 = vmul.f32 %v618, %v257
    %v643 = vmul.f32 %v623, %v361
    %v644 = vmul.f32 %v624, %v465
    %v645 = vsub.f32 %v641, %v643
    %v646 = vsub.f32 %v642, %v644
    %v647 = vmul.f32 %v623, %v154
    %v648 = vmul.f32 %v624, %v257
    %v649 = vmul.f32 %v617, %v361
    %v650 = vmul.f32 %v618, %v465
    %v651 = vadd.f32 %v647, %v649
    %v652 = vadd.f32 %v648, %v650
    %653 = vset.pattern.permute.xlu0 11
    %654 = vperm.xlu0 %653, %v38
    %v655 = vpop.permute.xlu0 %654
    %v657 = vmul.f32 %v655, %v645
    %v658 = vmul.f32 %v655, %v646
    %v659 = vadd.f32 %v639, %v657
    %v660 = vadd.f32 %v640, %v658
    %661 = vset.pattern.permute.xlu0 19
    %662 = vperm.xlu0 %661, %v38
    %v663 = vpop.permute.xlu0 %662
    %v665 = vmul.f32 %v663, %v651
    %v666 = vmul.f32 %v663, %v652
    %v667 = vadd.f32 %v659, %v665
    %v668 = vadd.f32 %v660, %v666
    %v669 = vmin.f32 %v667, %v668
    %670 = vmin.xlane.f32.xlu0 %v669
    %v671 = vpop.xlane.xlu0 %670
    %v672 = vmax.f32 %v667, %v668
    %673 = vmax.xlane.f32.xlu0 %v672
    %v674 = vpop.xlane.xlu0 %673
    %v675 = vsub.f32 %v674, %v671
    %v676 = vadd.f32 %v675, 1e-08
    %v677 = vrcp.pop %v676
    %v678 = vmul.f32 1.0, %v677
    %v679 = vsub.f32 %v667, %v671
    %v680 = vsub.f32 %v668, %v671
    %v681 = vmul.f32 %v679, %v678
    %v682 = vmul.f32 %v680, %v678
    %v683 = vadd.f32 %v681, 0.0
    %v684 = vadd.f32 %v682, 0.0
    %v685 = vmax.f32 %v683, 0.1
    %v686 = vmax.f32 %v684, 0.1
    %687 = vset.pattern.permute.xlu0 2
    %688 = vperm.xlu0 %687, %v38
    %v689 = vpop.permute.xlu0 %688
    %vm691 = vcmp.lt.f32.partialorder %v36, %v689
    %vm692 = vcmp.lt.f32.partialorder %v37, %v689
    %693 = vset.pattern.permute.xlu0 3
    %694 = vperm.xlu0 %693, %v38
    %v695 = vpop.permute.xlu0 %694
    %vm697 = vcmp.gt.f32.partialorder %v36, %v695
    %vm698 = vcmp.gt.f32.partialorder %v37, %v695
    %vm699 = vmor %vm691, %vm697
    %vm700 = vmor %vm692, %vm698
    %v701 = vsel %vm699, 0.0, %v685
    %v702 = vsel %vm700, 0.0, %v686
    %703 = vst [vmem:[#allocation9] sm:$0xff] %v701
    %704 = vst [vmem:[#allocation9 + $0x8] sm:$0xff] %v702
    // Predicated region
    $region18: #{tpu_custom_call.1} parent=1 // pred_check
      _
    $region19: #{tpu_custom_call.1} parent=1 // pred_check_branch
      %706 = sbr.rel (0) target = $region21
    $region20: #{tpu_custom_call.1} parent=1 // pred_region
      %s708 = ssub.s32 256, 256
      %709 = vsyncadd [#allocation6], %s708
      %s711 = sshll.u32 [#allocation9], 4
      %s712 = int_to_ptr.vmem [resolvable:$true] %s711
      %714 = dma.vmem_to_hbm [thread:$0]  %s712, 256, %s2, [#allocation6]
    $region21: #{tpu_custom_call.1} parent=1 // pred_fallthru
      _
    // Predicated region
    $region22: #{tpu_custom_call.1} parent=1 // pred_check
      _
    $region23: #{tpu_custom_call.1} parent=1 // pred_check_branch
      %716 = sbr.rel (0) target = $region25
    $region24: #{tpu_custom_call.1} parent=1 // pred_region
      %717 = dma.done [#allocation6], 256
    $region25: #{tpu_custom_call.1} parent=1 // pred_fallthru
      _
    %718 = vsyncpa [#allocation5], 1
    %719 = vsyncpa [#allocation8], 1
    %720 = vsyncpa [#allocation6], 1

</llo_original>
